<compile_context>
chip_gen: v6e
topology: v6e:2x2x1
jax: 0.10.0
libtpu: 0.0.40
codegen_flags: <defaults>
</compile_context>

<pallas_src>
import functools

import jax
import jax.numpy as jnp
from jax.experimental import pallas as pl
from jax.experimental.pallas import tpu as pltpu


def _round_up(x, m):
    return ((x + m - 1) // m) * m


def _cdiv(a, b):
    return -(-a // b)


def _vmem_capacity_bytes():
    # Per-TensorCore VMEM: 128 MiB on v5e/v6e, 64 MiB on v7x.  Fall back to the
    # smallest (v7x) figure if the query is unavailable.
    try:
        return int(pltpu.get_tpu_info().vmem_capacity_bytes)
    except Exception:
        return 64 << 20


def _pick_tile(extent, tile_cap, min_tiles=1):
    """Balanced, >=128-aligned tile for `extent`, at most ~`tile_cap` wide."""
    ext = _round_up(extent, 128)
    n = max(min_tiles, _cdiv(ext, tile_cap))
    n = min(n, ext // 128)                 # tile must stay >= 128
    tile = _round_up(_cdiv(ext, n), 128)
    n = _cdiv(ext, tile)
    return tile, n


def _tile_vmem_bytes(TM, TN, Dp, Hp, bx1, bx2, bout):
    return (2 * TM * Dp * bx1              # x1 tile, double-buffered
            + 2 * TN * Dp * bx2            # x2 tile, double-buffered
            + 2 * Dp * Hp * 2              # W (bf16), double-buffered
            + 2 * 8 * Hp * 4               # v (padded to one sublane tile)
            + 2 * TM * TN * bout           # output tile, double-buffered
            + TM * Hp * 2                  # x1v scratch (bf16)
            + TM * Hp * 4 + TN * Hp * 4)   # f32 rep temporaries


def attention_score_kernel(x1_ref, x2_ref, w_ref, v_ref, o_ref, x1v_ref):
    # x1_ref: (1, TM, Dp) f32/bf16   x2_ref: (1, TN, Dp) f32/bf16
    # w_ref : (Dp, Hp)    bf16       v_ref : (1, Hp)     f32
    # o_ref : (1, TM, TN)            x1v_ref: (TM, Hp)   bf16 scratch
    j = pl.program_id(2)

    # x1_rep (and the diag(v) scale) only depend on the (b, i) tile; compute
    # once at j == 0 and reuse across all j tiles.  Valid only because j is the
    # innermost, sequential ("arbitrary") grid axis starting at 0.
    @pl.when(j == 0)
    def _():
        r1 = jnp.dot(x1_ref[0].astype(jnp.bfloat16), w_ref[...],
                     preferred_element_type=jnp.float32)        # MXU, f32 accum
        # relu + v-scale in f32 (v5e-safe); single bf16 rounding after the scale.
        r1 = jnp.maximum(r1, 0.0) * v_ref[...]
        x1v_ref[...] = r1.astype(x1v_ref.dtype)

    r2 = jnp.dot(x2_ref[0].astype(jnp.bfloat16), w_ref[...],
                 preferred_element_type=jnp.float32)             # (TN, Hp) f32
    r2 = jnp.maximum(r2, 0.0)

    # scores = (relu(x1 W) * v) @ relu(x2 W)^T, contracting the last (H) dims:
    # the standard q.k^T pattern the MXU consumes without an XLU transpose.
    scores = jax.lax.dot_general(
        x1v_ref[...], r2.astype(jnp.bfloat16),
        dimension_numbers=(((1,), (1,)), ((), ())),
        preferred_element_type=jnp.float32)
    o_ref[0] = scores.astype(o_ref.dtype)


@functools.partial(jax.jit, static_argnames=("tm", "tn", "out_dtype"))
def attention_score(x1, x2, w, v, *, tm=2048, tn=512, out_dtype=jnp.float32):
    """
    x1: (B, L1, D)  x2: (B, L2, D)  w: (D, H) (== PyTorch weight.T)  v: (1, H)
    returns scores: (B, L1, L2) in out_dtype (float32 matches the PyTorch module).
    """
    B, L1, D = x1.shape
    _, L2, _ = x2.shape
    H = w.shape[1]

    Dp = _round_up(D, 128)
    Hp = _round_up(H, 128)

    out_bytes = jnp.dtype(out_dtype).itemsize
    budget = int(0.6 * _vmem_capacity_bytes())

    # Pick tiles (asymmetric: TM as large as possible so recompute / re-read of
    # x2 scales down with gi), then shrink until the tiles fit the VMEM budget.
    tm_cap, tn_cap = tm, tn
    min_i_tiles = 2 if B == 1 else 1       # keep both v7x TensorCores busy
    while True:
        TM, gi = _pick_tile(L1, tm_cap, min_tiles=min_i_tiles)
        TN, gj = _pick_tile(L2, tn_cap)
        need = _tile_vmem_bytes(TM, TN, Dp, Hp, 4, 4, out_bytes)
        if need <= budget or (TM <= 128 and TN <= 128):
            break
        if TM >= TN and TM > 128:
            tm_cap = max(128, TM // 2)
        else:
            tn_cap = max(128, TN // 2)

    L1p, L2p = TM * gi, TN * gj

    # Wrapper pad/cast passes only where they pay for themselves:
    #  * if a pad is required anyway, fuse the bf16 cast into that same pass;
    #  * x1 is read exactly once by the kernel -> never pre-cast just to cast;
    #  * x2 is re-read gi times -> pre-cast to bf16 once gi >= 3.
    pad_x1 = (L1p != L1) or (Dp != D)
    pad_x2 = (L2p != L2) or (Dp != D)
    if pad_x1:
        x1p = jnp.pad(x1, ((0, 0), (0, L1p - L1), (0, Dp - D))).astype(jnp.bfloat16)
    else:
        x1p = x1                            # cast at the MXU boundary in-kernel
    if pad_x2:
        x2p = jnp.pad(x2, ((0, 0), (0, L2p - L2), (0, Dp - D))).astype(jnp.bfloat16)
    elif gi >= 3:
        x2p = x2.astype(jnp.bfloat16)
    else:
        x2p = x2
    wp = jnp.pad(w, ((0, Dp - D), (0, Hp - H))).astype(jnp.bfloat16)
    vp = jnp.pad(v, ((0, 0), (0, Hp - H))).astype(jnp.float32)
    # Zero padding contributes exactly 0 to the scores (relu(0)=0, zero W
    # rows/cols, zero v entries); padded output rows/cols are sliced off below.

    bx1 = x1p.dtype.itemsize
    bx2 = x2p.dtype.itemsize
    vmem_needed = _tile_vmem_bytes(TM, TN, Dp, Hp, bx1, bx2, out_bytes)
    vmem_limit = int(min(budget, max(32 << 20, (vmem_needed * 3) // 2)))

    flops = int(2 * B * L1p * Dp * Hp          # x1_rep (once per i tile)
                + 2 * B * gi * L2p * Dp * Hp   # x2_rep (recomputed per i tile)
                + 2 * B * L1p * L2p * Hp)      # score matmul
    bytes_accessed = int(B * L1p * Dp * bx1 + B * gi * L2p * Dp * bx2
                         + Dp * Hp * 2 + Hp * 4 + B * L1p * L2p * out_bytes)

    out = pl.pallas_call(
        attention_score_kernel,
        out_shape=jax.ShapeDtypeStruct((B, L1p, L2p), out_dtype),
        grid_spec=pltpu.PrefetchScalarGridSpec(
            num_scalar_prefetch=0,
            grid=(B, gi, gj),
            in_specs=[
                pl.BlockSpec((1, TM, Dp), lambda b, i, j: (b, i, 0)),
                pl.BlockSpec((1, TN, Dp), lambda b, i, j: (b, j, 0)),
                pl.BlockSpec((Dp, Hp), lambda b, i, j: (0, 0)),
                pl.BlockSpec((1, Hp), lambda b, i, j: (0, 0)),
            ],
            out_specs=pl.BlockSpec((1, TM, TN), lambda b, i, j: (b, i, j)),
            scratch_shapes=[pltpu.VMEM((TM, Hp), jnp.bfloat16)],
        ),
        compiler_params=pltpu.CompilerParams(
            # j must stay "arbitrary": the x1v scratch is initialised only at
            # j == 0, so j has to run sequentially from 0 for every (b, i).
            dimension_semantics=("parallel", "parallel", "arbitrary"),
            vmem_limit_bytes=vmem_limit),
        cost_estimate=pl.CostEstimate(flops=flops, transcendentals=0,
                                      bytes_accessed=bytes_accessed),
    )(x1p, x2p, wp, vp)

    # No-op when L1/L2 are already tile multiples; otherwise one slice copy.
    return out[:, :L1, :L2]


def attention_score_ref(x1, x2, w, v):
    x1r = jnp.maximum(jnp.einsum("bld,dh->blh", x1, w), 0.0)
    x2r = jnp.maximum(jnp.einsum("bld,dh->blh", x2, w), 0.0)
    x2rv = x2r * v[None, :, :]
    return jnp.einsum("bih,bjh->bij", x1r, x2rv)


if __name__ == "__main__":
    # Small shapes consistent with the module's forward contract.
    B, L1, L2, D, H = 2, 8, 8, 32, 32

    key = jax.random.PRNGKey(0)
    k1, k2, kw = jax.random.split(key, 3)

    x1 = jax.random.normal(k1, (B, L1, D), dtype=jnp.float32)
    x2 = jax.random.normal(k2, (B, L2, D), dtype=jnp.float32)

    # nn.Linear(input_size, attention_hidden_size, bias=False): weight (H, D);
    # store transposed (D, H) so the kernel computes x @ W.
    w = jax.random.normal(kw, (D, H), dtype=jnp.float32) * (1.0 / D ** 0.5)

    # similarity_score=False: linear_final = ones(1, 1, H) -> kernel uses (1, H).
    v = jnp.ones((1, H), dtype=jnp.float32)

    scores = attention_score(x1, x2, w, v)
    jax.block_until_ready(scores)

    ref = attention_score_ref(x1, x2, w, v)
    assert scores.shape == (B, L1, L2)
    # bf16 MXU operands -> loosened tolerance vs the f32 reference.
    assert jnp.allclose(scores, ref, atol=5e-2, rtol=5e-2), (
        float(jnp.max(jnp.abs(scores - ref))))

    print("KERNEL_OK")
</pallas_src>

<mosaic_0001>
module attributes {stable_mosaic.version = 11 : i64} {
  func.func @attention_score_kernel(%arg0: i32, %arg1: i32, %arg2: i32, %arg3: memref<1x128x128xbf16, #tpu.memory_space<vmem>>, %arg4: memref<1x128x128xbf16, #tpu.memory_space<vmem>>, %arg5: memref<128x128xbf16, #tpu.memory_space<vmem>>, %arg6: memref<1x128xf32, #tpu.memory_space<vmem>>, %arg7: memref<1x128x128xf32, #tpu.memory_space<vmem>>, %arg8: memref<128x128xbf16, #tpu.memory_space<vmem>>) attributes {dimension_semantics = [#tpu.dimension_semantics<parallel>, #tpu.dimension_semantics<parallel>, #tpu.dimension_semantics<arbitrary>], iteration_bounds = array<i64: 2, 1, 1>, scalar_prefetch = 0 : i64, scratch_operands = 1 : i64, tpu.core_type = #tpu.core_type<tc>, window_params = [{transform_indices = @transform_0, window_bounds = array<i64: 1, 128, 128>}, {transform_indices = @transform_1, window_bounds = array<i64: 1, 128, 128>}, {pipeline_mode = #tpu.pipeline_mode<synchronous>, transform_indices = @transform_2, window_bounds = array<i64: 128, 128>}, {pipeline_mode = #tpu.pipeline_mode<synchronous>, transform_indices = @transform_3, window_bounds = array<i64: 1, 128>}, {transform_indices = @transform_4, window_bounds = array<i64: 1, 128, 128>}]} {
    %c0_i32 = arith.constant 0 : i32
    %0 = arith.cmpi eq, %arg2, %c0_i32 : i32
    %1 = arith.extui %0 : i1 to i32
    %c0_i32_0 = arith.constant 0 : i32
    %2 = arith.cmpi ne, %1, %c0_i32_0 : i32
    scf.if %2 {
      %c0_12 = arith.constant 0 : index
      %c0_13 = arith.constant 0 : index
      %c0_14 = arith.constant 0 : index
      %15 = vector.load %arg3[%c0_12, %c0_13, %c0_14] : memref<1x128x128xbf16, #tpu.memory_space<vmem>>, vector<1x128x128xbf16>
      %16 = vector.shape_cast %15 : vector<1x128x128xbf16> to vector<128x128xbf16>
      %c0_15 = arith.constant 0 : index
      %c0_16 = arith.constant 0 : index
      %17 = vector.load %arg5[%c0_15, %c0_16] : memref<128x128xbf16, #tpu.memory_space<vmem>>, vector<128x128xbf16>
      %cst_17 = arith.constant dense<0.000000e+00> : vector<128x128xf32>
      %18 = tpu.matmul %16, %17, %cst_17 {dimension_numbers = #tpu.dot_dimension_numbers<[1], [0], [0], [1], [0, 0, 1, 1], [], []>} : vector<128x128xbf16>, vector<128x128xbf16>, vector<128x128xf32> -> vector<128x128xf32>
      %cst_18 = arith.constant 0.000000e+00 : f32
      %19 = vector.broadcast %cst_18 : f32 to vector<128x128xf32>
      %20 = arith.maximumf %18, %19 : vector<128x128xf32>
      %c0_19 = arith.constant 0 : index
      %c0_20 = arith.constant 0 : index
      %21 = vector.load %arg6[%c0_19, %c0_20] : memref<1x128xf32, #tpu.memory_space<vmem>>, vector<1x128xf32>
      %22 = vector.broadcast %21 : vector<1x128xf32> to vector<128x128xf32>
      %23 = arith.mulf %20, %22 : vector<128x128xf32>
      %24 = arith.truncf %23 : vector<128x128xf32> to vector<128x128xbf16>
      %c0_21 = arith.constant 0 : index
      %c0_22 = arith.constant 0 : index
      %25 = vector.load %arg8[%c0_21, %c0_22] : memref<128x128xbf16, #tpu.memory_space<vmem>>, vector<128x128xbf16>
      tpu.vector_store %arg8[%c0_21, %c0_22], %24 {strides = array<i32>} : memref<128x128xbf16, #tpu.memory_space<vmem>>, vector<128x128xbf16>,
    } else {
    }
    %c0 = arith.constant 0 : index
    %c0_1 = arith.constant 0 : index
    %c0_2 = arith.constant 0 : index
    %3 = vector.load %arg4[%c0, %c0_1, %c0_2] : memref<1x128x128xbf16, #tpu.memory_space<vmem>>, vector<1x128x128xbf16>
    %4 = vector.shape_cast %3 : vector<1x128x128xbf16> to vector<128x128xbf16>
    %c0_3 = arith.constant 0 : index
    %c0_4 = arith.constant 0 : index
    %5 = vector.load %arg5[%c0_3, %c0_4] : memref<128x128xbf16, #tpu.memory_space<vmem>>, vector<128x128xbf16>
    %cst = arith.constant dense<0.000000e+00> : vector<128x128xf32>
    %6 = tpu.matmul %4, %5, %cst {dimension_numbers = #tpu.dot_dimension_numbers<[1], [0], [0], [1], [0, 0, 1, 1], [], []>} : vector<128x128xbf16>, vector<128x128xbf16>, vector<128x128xf32> -> vector<128x128xf32>
    %cst_5 = arith.constant 0.000000e+00 : f32
    %7 = vector.broadcast %cst_5 : f32 to vector<128x128xf32>
    %8 = arith.maximumf %6, %7 : vector<128x128xf32>
    %c0_6 = arith.constant 0 : index
    %c0_7 = arith.constant 0 : index
    %9 = vector.load %arg8[%c0_6, %c0_7] : memref<128x128xbf16, #tpu.memory_space<vmem>>, vector<128x128xbf16>
    %10 = arith.truncf %8 : vector<128x128xf32> to vector<128x128xbf16>
    %cst_8 = arith.constant dense<0.000000e+00> : vector<128x128xf32>
    %11 = tpu.matmul %9, %10, %cst_8 {dimension_numbers = #tpu.dot_dimension_numbers<[1], [1], [0], [0], [0, 0, 1, 0], [], []>} : vector<128x128xbf16>, vector<128x128xbf16>, vector<128x128xf32> -> vector<128x128xf32>
    %c0_9 = arith.constant 0 : index
    %c0_10 = arith.constant 0 : index
    %c0_11 = arith.constant 0 : index
    %12 = vector.load %arg7[%c0_9, %c0_10, %c0_11] : memref<1x128x128xf32, #tpu.memory_space<vmem>>, vector<1x128x128xf32>
    %13 = vector.shape_cast %12 : vector<1x128x128xf32> to vector<128x128xf32>
    %14 = vector.shape_cast %11 : vector<128x128xf32> to vector<1x128x128xf32>
    tpu.vector_store %arg7[%c0_9, %c0_10, %c0_11], %14 {strides = array<i32>} : memref<1x128x128xf32, #tpu.memory_space<vmem>>, vector<1x128x128xf32>,
    return
  }
  func.func @transform_0(%arg0: i32, %arg1: i32, %arg2: i32) -> (i32, i32, i32) {
    %c0_i32 = arith.constant 0 : i32
    %c0_i32_0 = arith.constant 0 : i32
    return %arg0, %arg1, %c0_i32 : i32, i32, i32
  }
  func.func @transform_1(%arg0: i32, %arg1: i32, %arg2: i32) -> (i32, i32, i32) {
    %c0_i32 = arith.constant 0 : i32
    %c0_i32_0 = arith.constant 0 : i32
    return %arg0, %arg2, %c0_i32 : i32, i32, i32
  }
  func.func @transform_2(%arg0: i32, %arg1: i32, %arg2: i32) -> (i32, i32) {
    %c0_i32 = arith.constant 0 : i32
    %c0_i32_0 = arith.constant 0 : i32
    %c0_i32_1 = arith.constant 0 : i32
    return %c0_i32, %c0_i32_0 : i32, i32
  }
  func.func @transform_3(%arg0: i32, %arg1: i32, %arg2: i32) -> (i32, i32) {
    %c0_i32 = arith.constant 0 : i32
    %c0_i32_0 = arith.constant 0 : i32
    %c0_i32_1 = arith.constant 0 : i32
    return %c0_i32, %c0_i32_0 : i32, i32
  }
  func.func @transform_4(%arg0: i32, %arg1: i32, %arg2: i32) -> (i32, i32, i32) {
    %c0_i32 = arith.constant 0 : i32
    return %arg0, %arg1, %arg2 : i32, i32, i32
  }
}

</mosaic_0001>

<llo_original>
// kernel: attention_score.1
$region0: #{attention_score.1}
  #allocation0 [shape = 'u32[]', space=smem, size = 0x4, offset = 0x4, fixed_abs, tag = 'smem constant byte address 0x4 - core index']
  #allocation1 [shape = 'u32[144,128]{1,0:T(1,128)}', space=vmem, size = 0x12000, scoped, tag = 'internal scratch']
  #allocation2 [shape = 'bf16[128,128]{1,0:T(8,128)(2,1)}', space=vmem, size = 0x8000, scoped, tag = 'scratch operand']
  %s0 = inlined_call_operand.vmem [shape: bf16[2,128,128], index: 0, kind: input, shape index: {}]
  %s1 = inlined_call_operand.vmem [shape: bf16[2,128,128], index: 1, kind: input, shape index: {}]
  %s2 = inlined_call_operand.vmem [shape: bf16[128,128], index: 2, kind: input, shape index: {}]
  %s3 = inlined_call_operand.vmem [shape: f32[1,128], index: 3, kind: input, shape index: {}]
  %s4 = inlined_call_operand.vmem [shape: f32[2,128,128], index: 4, kind: output, shape index: {}]
  %s5 = sld [smem:[#allocation0]]
  $region53: #{attention_score.1} parent=0
    _
  %s7 = ssub.s32 1, %s5
  %s8 = scalar_select 0, %s7, %s5
  loop: start=0, step=1, limit=4
  $region2: #{attention_score.1} parent=0 // loop_pre_header
    _
  $region3: #{attention_score.1} parent=0 // loop_header
    %s10 = sphi 0, %s14
    %p11 = scmp.ge.s32.totalorder %s10, 4
    %s17 = sphi 0, %s36
    %s18 = sphi 0, %s32
    %s19 = sphi 0, %s28
    %s20 = sphi 0, %s17
    %s21 = sphi 0, %s18
    %s22 = sphi 0, %s19
    %s23 = sphi 0, %s20
    %s24 = sphi 0, %s21
    %s25 = sphi 0, %s22
    %s41 = sphi 0, %s43
    %s44 = sphi 0, %s41
    %s45 = sphi 0, %s44
    %s61 = sphi 0, %s45
    %s69 = sphi 0, %s71
    %s72 = sphi 0, %s69
    %s73 = sphi 0, %s72
    %s89 = sphi 0, %s73
    %s93 = sphi 0, %s93
    %s95 = sphi 0, %s93
    %s96 = sphi 0, %s95
    %s110 = sphi 0, %s96
    %s114 = sphi 0, %s114
    %s116 = sphi 0, %s114
    %s117 = sphi 0, %s116
    %s131 = sphi 0, %s117
    %s141 = sphi 0, %s143
    %s144 = sphi 0, %s141
    %s145 = sphi 0, %s144
    %s161 = sphi 0, %s145
  $region4: #{attention_score.1} parent=0 // loop_header_branch
    %13 = sbr.rel (%p11) target = $region8
  $region5: #{attention_score.1} parent=0 // loop_body
    %s15 = ssub.s32 %s10, 1
    %s16 = ssub.s32 %s10, 2
    %s26 = sadd.s32 1, %s19
    %p27 = scmp.ge.s32.totalorder %s26, 1
    %s28 = scalar_select %p27, 0, %s26
    %s29 = sadd.s32 1, %s18
    %s30 = scalar_select %p27, %s29, %s18
    %p31 = scmp.ge.s32.totalorder %s30, 1
    %s32 = scalar_select %p31, 0, %s30
    %s33 = sadd.s32 1, %s17
    %s34 = scalar_select %p31, %s33, %s17
    %p35 = scmp.ge.s32.totalorder %s34, 2
    %s36 = scalar_select %p35, 0, %s34
    %s37 = ssub.s32 %s17, %s36
    %s38 = ssub.s32 %s18, %s32
    %s39 = sor.u32 %s37, %s38
    %p40 = scmp.eq.s32.totalorder %s39, 0
    %s42 = sadd.s32 %s41, 1
    %s43 = scalar_select %p40, %s41, %s42
    %p46 = pneg %p40
    %p47 = scmp.eq.s32.totalorder %s10, 1
    %p48 = por %p46, %p47
    %p49 = scmp.ne.s32.totalorder %s41, %s44
    %p50 = scmp.eq.s32.totalorder %s10, 0
    %p51 = por %p49, %p50
    %p52 = scmp.ne.s32.totalorder %s41, %s44
    %p53 = scmp.eq.s32.totalorder %s15, 1
    %p54 = por %p52, %p53
    %p55 = scmp.ne.s32.totalorder %s44, %s45
    %p56 = scmp.eq.s32.totalorder %s15, 0
    %p57 = por %p55, %p56
    %p58 = scmp.ne.s32.totalorder %s44, %s45
    %p59 = scmp.eq.s32.totalorder %s16, 1
    %p60 = por %p58, %p59
    %p62 = scmp.ne.s32.totalorder %s45, %s61
    %p63 = scmp.eq.s32.totalorder %s16, 0
    %p64 = por %p62, %p63
    %s65 = ssub.s32 %s17, %s36
    %s66 = ssub.s32 %s19, %s28
    %s67 = sor.u32 %s65, %s66
    %p68 = scmp.eq.s32.totalorder %s67, 0
    %s70 = sadd.s32 %s69, 1
    %s71 = scalar_select %p68, %s69, %s70
    %p74 = pneg %p68
    %p75 = scmp.eq.s32.totalorder %s10, 1
    %p76 = por %p74, %p75
    %p77 = scmp.ne.s32.totalorder %s69, %s72
    %p78 = scmp.eq.s32.totalorder %s10, 0
    %p79 = por %p77, %p78
    %p80 = scmp.ne.s32.totalorder %s69, %s72
    %p81 = scmp.eq.s32.totalorder %s15, 1
    %p82 = por %p80, %p81
    %p83 = scmp.ne.s32.totalorder %s72, %s73
    %p84 = scmp.eq.s32.totalorder %s15, 0
    %p85 = por %p83, %p84
    %p86 = scmp.ne.s32.totalorder %s72, %s73
    %p87 = scmp.eq.s32.totalorder %s16, 1
    %p88 = por %p86, %p87
    %p90 = scmp.ne.s32.totalorder %s73, %s89
    %p91 = scmp.eq.s32.totalorder %s16, 0
    %p92 = por %p90, %p91
    %s94 = sadd.s32 %s93, 1
    %p97 = scmp.eq.s32.totalorder %s10, 1
    %p98 = scmp.ne.s32.totalorder %s93, %s95
    %p99 = scmp.eq.s32.totalorder %s10, 0
    %p100 = por %p98, %p99
    %p101 = scmp.ne.s32.totalorder %s93, %s95
    %p102 = scmp.eq.s32.totalorder %s15, 1
    %p103 = por %p101, %p102
    %p104 = scmp.ne.s32.totalorder %s95, %s96
    %p105 = scmp.eq.s32.totalorder %s15, 0
    %p106 = por %p104, %p105
    %p107 = scmp.ne.s32.totalorder %s95, %s96
    %p108 = scmp.eq.s32.totalorder %s16, 1
    %p109 = por %p107, %p108
    %p111 = scmp.ne.s32.totalorder %s96, %s110
    %p112 = scmp.eq.s32.totalorder %s16, 0
    %p113 = por %p111, %p112
    %s115 = sadd.s32 %s114, 1
    %p118 = scmp.eq.s32.totalorder %s10, 1
    %p119 = scmp.ne.s32.totalorder %s114, %s116
    %p120 = scmp.eq.s32.totalorder %s10, 0
    %p121 = por %p119, %p120
    %p122 = scmp.ne.s32.totalorder %s114, %s116
    %p123 = scmp.eq.s32.totalorder %s15, 1
    %p124 = por %p122, %p123
    %p125 = scmp.ne.s32.totalorder %s116, %s117
    %p126 = scmp.eq.s32.totalorder %s15, 0
    %p127 = por %p125, %p126
    %p128 = scmp.ne.s32.totalorder %s116, %s117
    %p129 = scmp.eq.s32.totalorder %s16, 1
    %p130 = por %p128, %p129
    %p132 = scmp.ne.s32.totalorder %s117, %s131
    %p133 = scmp.eq.s32.totalorder %s16, 0
    %p134 = por %p132, %p133
    %s135 = ssub.s32 %s17, %s36
    %s136 = ssub.s32 %s18, %s32
    %s137 = sor.u32 %s135, %s136
    %s138 = ssub.s32 %s19, %s28
    %s139 = sor.u32 %s137, %s138
    %p140 = scmp.eq.s32.totalorder %s139, 0
    %s142 = sadd.s32 %s141, 1
    %s143 = scalar_select %p140, %s141, %s142
    %p146 = pneg %p140
    %p147 = scmp.eq.s32.totalorder %s10, 1
    %p148 = por %p146, %p147
    %p149 = scmp.ne.s32.totalorder %s141, %s144
    %p150 = scmp.eq.s32.totalorder %s10, 0
    %p151 = por %p149, %p150
    %p152 = scmp.ne.s32.totalorder %s141, %s144
    %p153 = scmp.eq.s32.totalorder %s15, 1
    %p154 = por %p152, %p153
    %p155 = scmp.ne.s32.totalorder %s144, %s145
    %p156 = scmp.eq.s32.totalorder %s15, 0
    %p157 = por %p155, %p156
    %p158 = scmp.ne.s32.totalorder %s144, %s145
    %p159 = scmp.eq.s32.totalorder %s16, 1
    %p160 = por %p158, %p159
    %p162 = scmp.ne.s32.totalorder %s145, %s161
    %p163 = scmp.eq.s32.totalorder %s16, 0
    %p164 = por %p162, %p163
    %p165 = scmp.le.s32.totalorder 1, %s10
    %p166 = scmp.lt.s32.totalorder %s10, 3
    %p167 = pnand %p165, %p166
    %p168 = pneg %p167
    // Predicated region
    $region9: #{attention_score.1} parent=5 // pred_check
      _
    $region10: #{attention_score.1} parent=5 // pred_check_branch
      %170 = sbr.rel (%p167) target = $region12
    $region11: #{attention_score.1} parent=5 // pred_region
      %s171 = ssub.s32 %s10, 1
      // Predicated region
      $region13: #{attention_score.1} parent=11 // pred_check
        %p172 = pneg %p106
      $region14: #{attention_score.1} parent=11 // pred_check_branch
        %174 = sbr.rel (%p172) target = $region16
      $region15: #{attention_score.1} parent=11 // pred_region
        _
      $region16: #{attention_score.1} parent=11 // pred_fallthru
        _
      // Predicated region
      $region17: #{attention_score.1} parent=11 // pred_check
        %p175 = pneg %p127
      $region18: #{attention_score.1} parent=11 // pred_check_branch
        %177 = sbr.rel (%p175) target = $region20
      $region19: #{attention_score.1} parent=11 // pred_region
        _
      $region20: #{attention_score.1} parent=11 // pred_fallthru
        _
    $region12: #{attention_score.1} parent=5 // pred_fallthru
      _
    %p178 = scmp.lt.s32.totalorder %s10, 2
    // Predicated region
    $region21: #{attention_score.1} parent=5 // pred_check
      %p179 = pneg %p178
    $region22: #{attention_score.1} parent=5 // pred_check_branch
      %181 = sbr.rel (%p179) target = $region24
    $region23: #{attention_score.1} parent=5 // pred_region
      // Predicated region
      $region25: #{attention_score.1} parent=23 // pred_check
        %p182 = pneg %p51
      $region26: #{attention_score.1} parent=23 // pred_check_branch
        %184 = sbr.rel (%p182) target = $region28
      $region27: #{attention_score.1} parent=23 // pred_region
        %s185 = smul.u32 16, %s18
        %p186 = scmp.lt.s32.totalorder %s17, 1
        %s187 = scalar_select %p186, %s17, 1
        %p188 = scmp.lt.s32.totalorder %s185, 15
        %s189 = scalar_select %p188, %s185, 15
        %s190 = smul.addr %s187, 16
        %s191 = sadd.s32 %s189, %s190
        %s192 = smul.addr %s191, 4
        %s193 = scalar_lea.vmem %s0, %s192
        %s194 = smul.u32 16, %s18
      $region28: #{attention_score.1} parent=23 // pred_fallthru
        _
      // Predicated region
      $region29: #{attention_score.1} parent=23 // pred_check
        %p195 = pneg %p79
      $region30: #{attention_score.1} parent=23 // pred_check_branch
        %197 = sbr.rel (%p195) target = $region32
      $region31: #{attention_score.1} parent=23 // pred_region
        %s198 = smul.u32 16, %s19
        %p199 = scmp.lt.s32.totalorder %s17, 1
        %s200 = scalar_select %p199, %s17, 1
        %p201 = scmp.lt.s32.totalorder %s198, 15
        %s202 = scalar_select %p201, %s198, 15
        %s203 = smul.addr %s200, 16
        %s204 = sadd.s32 %s202, %s203
        %s205 = smul.addr %s204, 4
        %s206 = scalar_lea.vmem %s1, %s205
        %s207 = smul.u32 16, %s19
      $region32: #{attention_score.1} parent=23 // pred_fallthru
        _
    $region24: #{attention_score.1} parent=5 // pred_fallthru
      _
    %p208 = scmp.le.s32.totalorder 1, %s10
    %p209 = scmp.lt.s32.totalorder %s10, 3
    %p210 = pnand %p208, %p209
    %p211 = pneg %p210
    // Predicated region
    $region33: #{attention_score.1} parent=5 // pred_check
      _
    $region34: #{attention_score.1} parent=5 // pred_check_branch
      %213 = sbr.rel (%p210) target = $region36
    $region35: #{attention_score.1} parent=5 // pred_region
      %s214 = ssub.s32 %s10, 1
      %s215 = smul.u32 16, %s21
      %p216 = scmp.lt.s32.totalorder %s20, 1
      %s217 = scalar_select %p216, %s20, 1
      %p218 = scmp.lt.s32.totalorder %s215, 15
      %s219 = scalar_select %p218, %s215, 15
      %s220 = smul.addr %s217, 16
      %s221 = sadd.s32 %s219, %s220
      %s222 = smul.addr %s221, 4
      %s223 = scalar_lea.vmem %s0, %s222
      %p224 = pneg %p57
      %p225 = pneg %p54
      %s226 = smul.u32 16, %s22
      %p227 = scmp.lt.s32.totalorder %s20, 1
      %s228 = scalar_select %p227, %s20, 1
      %p229 = scmp.lt.s32.totalorder %s226, 15
      %s230 = scalar_select %p229, %s226, 15
      %s231 = smul.addr %s228, 16
      %s232 = sadd.s32 %s230, %s231
      %s233 = smul.addr %s232, 4
      %s234 = scalar_lea.vmem %s1, %s233
      %p235 = pneg %p85
      %p236 = pneg %p82
      %p237 = pneg %p106
      %p238 = pneg %p103
      %p239 = pneg %p127
      %p240 = pneg %p124
      %p241 = pneg %p157
      %p242 = pneg %p154
      %s243 = smul.u32 16, %s21
      %p244 = scmp.lt.s32.totalorder %s20, 1
      %s245 = scalar_select %p244, %s20, 1
      %p246 = scmp.lt.s32.totalorder %s243, 15
      %s247 = scalar_select %p246, %s243, 15
      %p248 = scmp.lt.s32.totalorder %s22, 0
      %s249 = scalar_select %p248, %s22, 0
      %s250 = sadd.s32 %s249, %s247
      %s251 = smul.addr %s245, 16
      %s252 = sadd.s32 %s250, %s251
      %s253 = smul.addr %s252, 8
      %s254 = scalar_lea.vmem %s4, %s253
      %s255 = smul.u32 16, %s21
      %p256 = scmp.lt.s32.totalorder %s20, 1
      %s257 = scalar_select %p256, %s20, 1
      %p258 = scmp.lt.s32.totalorder %s255, 15
      %s259 = scalar_select %p258, %s255, 15
      %s260 = smul.addr %s257, 16
      %s261 = sadd.s32 %s259, %s260
      %s262 = smul.addr %s261, 4
      %s263 = scalar_lea.vmem %s0, %s262
      %s264 = smul.u32 16, %s21
      %s265 = smul.u32 16, %s22
      %p266 = scmp.lt.s32.totalorder %s20, 1
      %s267 = scalar_select %p266, %s20, 1
      %p268 = scmp.lt.s32.totalorder %s265, 15
      %s269 = scalar_select %p268, %s265, 15
      %s270 = smul.addr %s267, 16
      %s271 = sadd.s32 %s269, %s270
      %s272 = smul.addr %s271, 4
      %s273 = scalar_lea.vmem %s1, %s272
      %s274 = smul.u32 16, %s22
      %s275 = smul.u32 16, %s21
      %p276 = scmp.lt.s32.totalorder %s20, 1
      %s277 = scalar_select %p276, %s20, 1
      %p278 = scmp.lt.s32.totalorder %s275, 15
      %s279 = scalar_select %p278, %s275, 15
      %p280 = scmp.lt.s32.totalorder %s22, 0
      %s281 = scalar_select %p280, %s22, 0
      %s282 = sadd.s32 %s281, %s279
      %s283 = smul.addr %s277, 16
      %s284 = sadd.s32 %s282, %s283
      %s285 = smul.addr %s284, 8
      %s286 = scalar_lea.vmem %s4, %s285
      %s287 = smul.u32 16, %s21
      %p289 = scmp.eq.s32.totalorder %s22, 0
      // Predicated region
      $region37: #{attention_score.1} parent=35 // pred_check
        %p290 = pneg %p289
      $region38: #{attention_score.1} parent=35 // pred_check_branch
        %292 = sbr.rel (%p290) target = $region40
      $region39: #{attention_score.1} parent=35 // pred_region
        %v293 = vld [vmem:[%s263] sm:$0xf]
        %v294 = vld [vmem:[%s263 + $0x4] sm:$0xf]
        %v295 = vld [vmem:[%s263 + $0x8] sm:$0xf]
        %v296 = vld [vmem:[%s263 + $0xc] sm:$0xf]
        %v297 = vld [vmem:[%s263 + $0x10] sm:$0xf]
        %v298 = vld [vmem:[%s263 + $0x14] sm:$0xf]
        %v299 = vld [vmem:[%s263 + $0x18] sm:$0xf]
        %v300 = vld [vmem:[%s263 + $0x1c] sm:$0xf]
        %v301 = vld [vmem:[%s263 + $0x20] sm:$0xf]
        %v302 = vld [vmem:[%s263 + $0x24] sm:$0xf]
        %v303 = vld [vmem:[%s263 + $0x28] sm:$0xf]
        %v304 = vld [vmem:[%s263 + $0x2c] sm:$0xf]
        %v305 = vld [vmem:[%s263 + $0x30] sm:$0xf]
        %v306 = vld [vmem:[%s263 + $0x34] sm:$0xf]
        %v307 = vld [vmem:[%s263 + $0x38] sm:$0xf]
        %v308 = vld [vmem:[%s263 + $0x3c] sm:$0xf]
        %v309 = vld [vmem:[%s2] sm:$0xf]
        %v310 = vld [vmem:[%s2 + $0x4] sm:$0xf]
        %v311 = vld [vmem:[%s2 + $0x8] sm:$0xf]
        %v312 = vld [vmem:[%s2 + $0xc] sm:$0xf]
        %v313 = vld [vmem:[%s2 + $0x10] sm:$0xf]
        %v314 = vld [vmem:[%s2 + $0x14] sm:$0xf]
        %v315 = vld [vmem:[%s2 + $0x18] sm:$0xf]
        %v316 = vld [vmem:[%s2 + $0x1c] sm:$0xf]
        %v317 = vld [vmem:[%s2 + $0x20] sm:$0xf]
        %v318 = vld [vmem:[%s2 + $0x24] sm:$0xf]
        %v319 = vld [vmem:[%s2 + $0x28] sm:$0xf]
        %v320 = vld [vmem:[%s2 + $0x2c] sm:$0xf]
        %v321 = vld [vmem:[%s2 + $0x30] sm:$0xf]
        %v322 = vld [vmem:[%s2 + $0x34] sm:$0xf]
        %v323 = vld [vmem:[%s2 + $0x38] sm:$0xf]
        %v324 = vld [vmem:[%s2 + $0x3c] sm:$0xf]
        %v341 = vunpack.c.l.b16 %v293
        %v342 = vunpack.c.l.b16 %v294
        %v343 = vunpack.c.l.b16 %v295
        %v344 = vunpack.c.l.b16 %v296
        %v345 = vunpack.c.l.b16 %v297
        %v346 = vunpack.c.l.b16 %v298
        %v347 = vunpack.c.l.b16 %v299
        %v348 = vunpack.c.l.b16 %v300
        %v349 = vunpack.c.l.b16 %v301
        %v350 = vunpack.c.l.b16 %v302
        %v351 = vunpack.c.l.b16 %v303
        %v352 = vunpack.c.l.b16 %v304
        %v353 = vunpack.c.l.b16 %v305
        %v354 = vunpack.c.l.b16 %v306
        %v355 = vunpack.c.l.b16 %v307
        %v356 = vunpack.c.l.b16 %v308
        %v357 = vpack.c.b16 %v342, %v341
        %v358 = vpack.c.b16 %v344, %v343
        %v359 = vpack.c.b16 %v346, %v345
        %v360 = vpack.c.b16 %v348, %v347
        %v361 = vpack.c.b16 %v350, %v349
        %v362 = vpack.c.b16 %v352, %v351
        %v363 = vpack.c.b16 %v354, %v353
        %v364 = vpack.c.b16 %v356, %v355
        %v389 = vunpack.c.l.b16 %v309
        %v390 = vunpack.c.l.b16 %v310
        %v391 = vunpack.c.l.b16 %v311
        %v392 = vunpack.c.l.b16 %v312
        %v393 = vunpack.c.l.b16 %v313
        %v394 = vunpack.c.l.b16 %v314
        %v395 = vunpack.c.l.b16 %v315
        %v396 = vunpack.c.l.b16 %v316
        %v397 = vunpack.c.l.b16 %v317
        %v398 = vunpack.c.l.b16 %v318
        %v399 = vunpack.c.l.b16 %v319
        %v400 = vunpack.c.l.b16 %v320
        %v401 = vunpack.c.l.b16 %v321
        %v402 = vunpack.c.l.b16 %v322
        %v403 = vunpack.c.l.b16 %v323
        %v404 = vunpack.c.l.b16 %v324
        %v405 = vpack.c.b16 %v390, %v389
        %v406 = vpack.c.b16 %v392, %v391
        %v407 = vpack.c.b16 %v394, %v393
        %v408 = vpack.c.b16 %v396, %v395
        %v409 = vpack.c.b16 %v398, %v397
        %v410 = vpack.c.b16 %v400, %v399
        %v411 = vpack.c.b16 %v402, %v401
        %v412 = vpack.c.b16 %v404, %v403
        %421 = vmatprep.subr.bf16.mxu0 0
        %422 = vmatpush1.bf16.msra.mxu0 %v412
        %423 = vmatprep.subr.bf16.mxu0 0
        %424 = vmatpush1.bf16.msra.mxu0 %v411
        %425 = vmatprep.subr.bf16.mxu0 0
        %426 = vmatpush1.bf16.msra.mxu0 %v410
        %427 = vmatprep.subr.bf16.mxu0 0
        %428 = vmatpush1.bf16.msra.mxu0 %v409
        %429 = vmatprep.subr.bf16.mxu0 0
        %430 = vmatpush1.bf16.msra.mxu0 %v408
        %431 = vmatprep.subr.bf16.mxu0 0
        %432 = vmatpush1.bf16.msra.mxu0 %v407
        %433 = vmatprep.subr.bf16.mxu0 0
        %434 = vmatpush1.bf16.msra.mxu0 %v406
        %435 = vmatprep.subr.bf16.mxu0 0
        %436 = vmatpush1.bf16.msra.mxu0 %v405
        %437 = vmatprep.subr.bf16.mxu0 0
        %438 = vmatpush2.bf16.msra.mxu0 0
        %439 = vmatprep.subr.bf16.mxu0 0
        %440 = vmatpush2.bf16.msra.mxu0 0
        %441 = vmatprep.subr.bf16.mxu0 0
        %442 = vmatpush2.bf16.msra.mxu0 0
        %443 = vmatprep.subr.bf16.mxu0 0
        %444 = vmatpush2.bf16.msra.mxu0 0
        %445 = vmatprep.subr.bf16.mxu0 0
        %446 = vmatpush2.bf16.msra.mxu0 0
        %447 = vmatprep.subr.bf16.mxu0 0
        %448 = vmatpush2.bf16.msra.mxu0 0
        %449 = vmatprep.subr.bf16.mxu0 0
        %450 = vmatpush2.bf16.msra.mxu0 0
        %451 = vmatprep.subr.bf16.mxu0 0
        %452 = vmatpush2.bf16.msra.mxu0 0
        %453 = vmatprep.mubr.bf16.mxu0 0
        %454 = vmatmul.mubr.bf16.gmra.mxu0 %v357
        %v455 = vpop.f32.mrf.mxu0
        %v456 = vadd.f32 0.0, %v455
        %v457 = vpop.f32.mrf.mxu0
        %v458 = vpop.f32.mrf.mxu0
        %v459 = vadd.f32 0.0, %v458
        %v460 = vpop.f32.mrf.mxu0
        %461 = vmatprep.mubr.bf16.mxu0 0
        %462 = vmatmul.mubr.bf16.gmra.mxu0 %v358
        %v463 = vpop.f32.mrf.mxu0
        %v464 = vadd.f32 0.0, %v463
        %v465 = vpop.f32.mrf.mxu0
        %v466 = vpop.f32.mrf.mxu0
        %v467 = vadd.f32 0.0, %v466
        %v468 = vpop.f32.mrf.mxu0
        %469 = vmatprep.mubr.bf16.mxu0 0
        %470 = vmatmul.mubr.bf16.gmra.mxu0 %v359
        %v471 = vpop.f32.mrf.mxu0
        %v472 = vadd.f32 0.0, %v471
        %v473 = vpop.f32.mrf.mxu0
        %v474 = vpop.f32.mrf.mxu0
        %v475 = vadd.f32 0.0, %v474
        %v476 = vpop.f32.mrf.mxu0
        %477 = vmatprep.mubr.bf16.mxu0 0
        %478 = vmatmul.mubr.bf16.gmra.mxu0 %v360
        %v479 = vpop.f32.mrf.mxu0
        %v480 = vadd.f32 0.0, %v479
        %v481 = vpop.f32.mrf.mxu0
        %v482 = vpop.f32.mrf.mxu0
        %v483 = vadd.f32 0.0, %v482
        %v484 = vpop.f32.mrf.mxu0
        %485 = vmatprep.mubr.bf16.mxu0 0
        %486 = vmatmul.mubr.bf16.gmra.mxu0 %v361
        %v487 = vpop.f32.mrf.mxu0
        %v488 = vadd.f32 0.0, %v487
        %v489 = vpop.f32.mrf.mxu0
        %v490 = vpop.f32.mrf.mxu0
        %v491 = vadd.f32 0.0, %v490
        %v492 = vpop.f32.mrf.mxu0
        %493 = vmatprep.mubr.bf16.mxu0 0
        %494 = vmatmul.mubr.bf16.gmra.mxu0 %v362
        %v495 = vpop.f32.mrf.mxu0
        %v496 = vadd.f32 0.0, %v495
        %v497 = vpop.f32.mrf.mxu0
        %v498 = vpop.f32.mrf.mxu0
        %v499 = vadd.f32 0.0, %v498
        %v500 = vpop.f32.mrf.mxu0
        %501 = vmatprep.mubr.bf16.mxu0 0
        %502 = vmatmul.mubr.bf16.gmra.mxu0 %v363
        %v503 = vpop.f32.mrf.mxu0
        %v504 = vadd.f32 0.0, %v503
        %v505 = vpop.f32.mrf.mxu0
        %v506 = vpop.f32.mrf.mxu0
        %v507 = vadd.f32 0.0, %v506
        %v508 = vpop.f32.mrf.mxu0
        %509 = vmatprep.mubr.bf16.mxu0 0
        %510 = vmatmul.mubr.bf16.gmra.mxu0 %v364
        %v511 = vpop.f32.mrf.mxu0
        %v512 = vadd.f32 0.0, %v511
        %v513 = vpop.f32.mrf.mxu0
        %v514 = vpop.f32.mrf.mxu0
        %v515 = vadd.f32 0.0, %v514
        %v516 = vpop.f32.mrf.mxu0
        %517 = vdwg.mxu0
        %v518 = vmax.f32 %v456, 0.0
        %v519 = vmax.f32 %v459, 0.0
        %v520 = vmax.f32 %v464, 0.0
        %v521 = vmax.f32 %v467, 0.0
        %v522 = vmax.f32 %v472, 0.0
        %v523 = vmax.f32 %v475, 0.0
        %v524 = vmax.f32 %v480, 0.0
        %v525 = vmax.f32 %v483, 0.0
        %v526 = vmax.f32 %v488, 0.0
        %v527 = vmax.f32 %v491, 0.0
        %v528 = vmax.f32 %v496, 0.0
        %v529 = vmax.f32 %v499, 0.0
        %v530 = vmax.f32 %v504, 0.0
        %v531 = vmax.f32 %v507, 0.0
        %v532 = vmax.f32 %v512, 0.0
        %v533 = vmax.f32 %v515, 0.0
        %v534 = vld [vmem:[%s3] sm:$0x1]
        %v536 = vlaneseq
        %v537 = vshrl.u32 %v536, 7
        %v538 = vsub.s32 0, %v537
        %v539 = vrot.slane %v534, %v538
        %v541 = vmul.f32 %v518, %v539
        %v542 = vmul.f32 %v519, %v539
        %v543 = vmul.f32 %v520, %v539
        %v544 = vmul.f32 %v521, %v539
        %v545 = vmul.f32 %v522, %v539
        %v546 = vmul.f32 %v523, %v539
        %v547 = vmul.f32 %v524, %v539
        %v548 = vmul.f32 %v525, %v539
        %v549 = vmul.f32 %v526, %v539
        %v550 = vmul.f32 %v527, %v539
        %v551 = vmul.f32 %v528, %v539
        %v552 = vmul.f32 %v529, %v539
        %v553 = vmul.f32 %v530, %v539
        %v554 = vmul.f32 %v531, %v539
        %v555 = vmul.f32 %v532, %v539
        %v556 = vmul.f32 %v533, %v539
        %v557 = vpack.c.bf16 %v542, %v541
        %v558 = vpack.c.bf16 %v544, %v543
        %v559 = vpack.c.bf16 %v546, %v545
        %v560 = vpack.c.bf16 %v548, %v547
        %v561 = vpack.c.bf16 %v550, %v549
        %v562 = vpack.c.bf16 %v552, %v551
        %v563 = vpack.c.bf16 %v554, %v553
        %v564 = vpack.c.bf16 %v556, %v555
        %v573 = vunpack.c.l.b16 %v557
        %v574 = vunpack.c.h.b16 %v557
        %v575 = vunpack.c.l.b16 %v558
        %v576 = vunpack.c.h.b16 %v558
        %v577 = vunpack.c.l.b16 %v559
        %v578 = vunpack.c.h.b16 %v559
        %v579 = vunpack.c.l.b16 %v560
        %v580 = vunpack.c.h.b16 %v560
        %v581 = vunpack.c.l.b16 %v561
        %v582 = vunpack.c.h.b16 %v561
        %v583 = vunpack.c.l.b16 %v562
        %v584 = vunpack.c.h.b16 %v562
        %v585 = vunpack.c.l.b16 %v563
        %v586 = vunpack.c.h.b16 %v563
        %v587 = vunpack.c.l.b16 %v564
        %v588 = vunpack.c.h.b16 %v564
        %v589 = vpack.c.b16 %v573, %v573
        %v590 = vpack.c.b16 %v574, %v574
        %v591 = vpack.c.b16 %v575, %v575
        %v592 = vpack.c.b16 %v576, %v576
        %v593 = vpack.c.b16 %v577, %v577
        %v594 = vpack.c.b16 %v578, %v578
        %v595 = vpack.c.b16 %v579, %v579
        %v596 = vpack.c.b16 %v580, %v580
        %v597 = vpack.c.b16 %v581, %v581
        %v598 = vpack.c.b16 %v582, %v582
        %v599 = vpack.c.b16 %v583, %v583
        %v600 = vpack.c.b16 %v584, %v584
        %v601 = vpack.c.b16 %v585, %v585
        %v602 = vpack.c.b16 %v586, %v586
        %v603 = vpack.c.b16 %v587, %v587
        %v604 = vpack.c.b16 %v588, %v588
        %621 = vst [vmem:[#allocation2] sm:$0xf] %v589
        %622 = vst [vmem:[#allocation2 + $0x4] sm:$0xf] %v590
        %623 = vst [vmem:[#allocation2 + $0x8] sm:$0xf] %v591
        %624 = vst [vmem:[#allocation2 + $0xc] sm:$0xf] %v592
        %625 = vst [vmem:[#allocation2 + $0x10] sm:$0xf] %v593
        %626 = vst [vmem:[#allocation2 + $0x14] sm:$0xf] %v594
        %627 = vst [vmem:[#allocation2 + $0x18] sm:$0xf] %v595
        %628 = vst [vmem:[#allocation2 + $0x1c] sm:$0xf] %v596
        %629 = vst [vmem:[#allocation2 + $0x20] sm:$0xf] %v597
        %630 = vst [vmem:[#allocation2 + $0x24] sm:$0xf] %v598
        %631 = vst [vmem:[#allocation2 + $0x28] sm:$0xf] %v599
        %632 = vst [vmem:[#allocation2 + $0x2c] sm:$0xf] %v600
        %633 = vst [vmem:[#allocation2 + $0x30] sm:$0xf] %v601
        %634 = vst [vmem:[#allocation2 + $0x34] sm:$0xf] %v602
        %635 = vst [vmem:[#allocation2 + $0x38] sm:$0xf] %v603
        %636 = vst [vmem:[#allocation2 + $0x3c] sm:$0xf] %v604
      $region40: #{attention_score.1} parent=35 // pred_fallthru
        _
      %v637 = vld [vmem:[%s273] sm:$0xf]
      %v638 = vld [vmem:[%s273 + $0x4] sm:$0xf]
      %v639 = vld [vmem:[%s273 + $0x8] sm:$0xf]
      %v640 = vld [vmem:[%s273 + $0xc] sm:$0xf]
      %v641 = vld [vmem:[%s273 + $0x10] sm:$0xf]
      %v642 = vld [vmem:[%s273 + $0x14] sm:$0xf]
      %v643 = vld [vmem:[%s273 + $0x18] sm:$0xf]
      %v644 = vld [vmem:[%s273 + $0x1c] sm:$0xf]
      %v645 = vld [vmem:[%s273 + $0x20] sm:$0xf]
      %v646 = vld [vmem:[%s273 + $0x24] sm:$0xf]
      %v647 = vld [vmem:[%s273 + $0x28] sm:$0xf]
      %v648 = vld [vmem:[%s273 + $0x2c] sm:$0xf]
      %v649 = vld [vmem:[%s273 + $0x30] sm:$0xf]
      %v650 = vld [vmem:[%s273 + $0x34] sm:$0xf]
      %v651 = vld [vmem:[%s273 + $0x38] sm:$0xf]
      %v652 = vld [vmem:[%s273 + $0x3c] sm:$0xf]
      %v653 = vld [vmem:[%s2] sm:$0xf]
      %v654 = vld [vmem:[%s2 + $0x4] sm:$0xf]
      %v655 = vld [vmem:[%s2 + $0x8] sm:$0xf]
      %v656 = vld [vmem:[%s2 + $0xc] sm:$0xf]
      %v657 = vld [vmem:[%s2 + $0x10] sm:$0xf]
      %v658 = vld [vmem:[%s2 + $0x14] sm:$0xf]
      %v659 = vld [vmem:[%s2 + $0x18] sm:$0xf]
      %v660 = vld [vmem:[%s2 + $0x1c] sm:$0xf]
      %v661 = vld [vmem:[%s2 + $0x20] sm:$0xf]
      %v662 = vld [vmem:[%s2 + $0x24] sm:$0xf]
      %v663 = vld [vmem:[%s2 + $0x28] sm:$0xf]
      %v664 = vld [vmem:[%s2 + $0x2c] sm:$0xf]
      %v665 = vld [vmem:[%s2 + $0x30] sm:$0xf]
      %v666 = vld [vmem:[%s2 + $0x34] sm:$0xf]
      %v667 = vld [vmem:[%s2 + $0x38] sm:$0xf]
      %v668 = vld [vmem:[%s2 + $0x3c] sm:$0xf]
      %v685 = vunpack.c.l.b16 %v637
      %v686 = vunpack.c.l.b16 %v638
      %v687 = vunpack.c.l.b16 %v639
      %v688 = vunpack.c.l.b16 %v640
      %v689 = vunpack.c.l.b16 %v641
      %v690 = vunpack.c.l.b16 %v642
      %v691 = vunpack.c.l.b16 %v643
      %v692 = vunpack.c.l.b16 %v644
      %v693 = vunpack.c.l.b16 %v645
      %v694 = vunpack.c.l.b16 %v646
      %v695 = vunpack.c.l.b16 %v647
      %v696 = vunpack.c.l.b16 %v648
      %v697 = vunpack.c.l.b16 %v649
      %v698 = vunpack.c.l.b16 %v650
      %v699 = vunpack.c.l.b16 %v651
      %v700 = vunpack.c.l.b16 %v652
      %v701 = vpack.c.b16 %v686, %v685
      %v702 = vpack.c.b16 %v688, %v687
      %v703 = vpack.c.b16 %v690, %v689
      %v704 = vpack.c.b16 %v692, %v691
      %v705 = vpack.c.b16 %v694, %v693
      %v706 = vpack.c.b16 %v696, %v695
      %v707 = vpack.c.b16 %v698, %v697
      %v708 = vpack.c.b16 %v700, %v699
      %v733 = vunpack.c.l.b16 %v653
      %v734 = vunpack.c.l.b16 %v654
      %v735 = vunpack.c.l.b16 %v655
      %v736 = vunpack.c.l.b16 %v656
      %v737 = vunpack.c.l.b16 %v657
      %v738 = vunpack.c.l.b16 %v658
      %v739 = vunpack.c.l.b16 %v659
      %v740 = vunpack.c.l.b16 %v660
      %v741 = vunpack.c.l.b16 %v661
      %v742 = vunpack.c.l.b16 %v662
      %v743 = vunpack.c.l.b16 %v663
      %v744 = vunpack.c.l.b16 %v664
      %v745 = vunpack.c.l.b16 %v665
      %v746 = vunpack.c.l.b16 %v666
      %v747 = vunpack.c.l.b16 %v667
      %v748 = vunpack.c.l.b16 %v668
      %v749 = vpack.c.b16 %v734, %v733
      %v750 = vpack.c.b16 %v736, %v735
      %v751 = vpack.c.b16 %v738, %v737
      %v752 = vpack.c.b16 %v740, %v739
      %v753 = vpack.c.b16 %v742, %v741
      %v754 = vpack.c.b16 %v744, %v743
      %v755 = vpack.c.b16 %v746, %v745
      %v756 = vpack.c.b16 %v748, %v747
      %765 = vmatprep.subr.bf16.mxu0 0
      %766 = vmatpush1.bf16.msra.mxu0 %v756
      %767 = vmatprep.subr.bf16.mxu0 0
      %768 = vmatpush1.bf16.msra.mxu0 %v755
      %769 = vmatprep.subr.bf16.mxu0 0
      %770 = vmatpush1.bf16.msra.mxu0 %v754
      %771 = vmatprep.subr.bf16.mxu0 0
      %772 = vmatpush1.bf16.msra.mxu0 %v753
      %773 = vmatprep.subr.bf16.mxu0 0
      %774 = vmatpush1.bf16.msra.mxu0 %v752
      %775 = vmatprep.subr.bf16.mxu0 0
      %776 = vmatpush1.bf16.msra.mxu0 %v751
      %777 = vmatprep.subr.bf16.mxu0 0
      %778 = vmatpush1.bf16.msra.mxu0 %v750
      %779 = vmatprep.subr.bf16.mxu0 0
      %780 = vmatpush1.bf16.msra.mxu0 %v749
      %781 = vmatprep.subr.bf16.mxu0 0
      %782 = vmatpush2.bf16.msra.mxu0 0
      %783 = vmatprep.subr.bf16.mxu0 0
      %784 = vmatpush2.bf16.msra.mxu0 0
      %785 = vmatprep.subr.bf16.mxu0 0
      %786 = vmatpush2.bf16.msra.mxu0 0
      %787 = vmatprep.subr.bf16.mxu0 0
      %788 = vmatpush2.bf16.msra.mxu0 0
      %789 = vmatprep.subr.bf16.mxu0 0
      %790 = vmatpush2.bf16.msra.mxu0 0
      %791 = vmatprep.subr.bf16.mxu0 0
      %792 = vmatpush2.bf16.msra.mxu0 0
      %793 = vmatprep.subr.bf16.mxu0 0
      %794 = vmatpush2.bf16.msra.mxu0 0
      %795 = vmatprep.subr.bf16.mxu0 0
      %796 = vmatpush2.bf16.msra.mxu0 0
      %797 = vmatprep.mubr.bf16.mxu0 0
      %798 = vmatmul.mubr.bf16.gmra.mxu0 %v701
      %v799 = vpop.f32.mrf.mxu0
      %v800 = vadd.f32 0.0, %v799
      %v801 = vpop.f32.mrf.mxu0
      %v802 = vpop.f32.mrf.mxu0
      %v803 = vadd.f32 0.0, %v802
      %v804 = vpop.f32.mrf.mxu0
      %805 = vmatprep.mubr.bf16.mxu0 0
      %806 = vmatmul.mubr.bf16.gmra.mxu0 %v702
      %v807 = vpop.f32.mrf.mxu0
      %v808 = vadd.f32 0.0, %v807
      %v809 = vpop.f32.mrf.mxu0
      %v810 = vpop.f32.mrf.mxu0
      %v811 = vadd.f32 0.0, %v810
      %v812 = vpop.f32.mrf.mxu0
      %813 = vmatprep.mubr.bf16.mxu0 0
      %814 = vmatmul.mubr.bf16.gmra.mxu0 %v703
      %v815 = vpop.f32.mrf.mxu0
      %v816 = vadd.f32 0.0, %v815
      %v817 = vpop.f32.mrf.mxu0
      %v818 = vpop.f32.mrf.mxu0
      %v819 = vadd.f32 0.0, %v818
      %v820 = vpop.f32.mrf.mxu0
      %821 = vmatprep.mubr.bf16.mxu0 0
      %822 = vmatmul.mubr.bf16.gmra.mxu0 %v704
      %v823 = vpop.f32.mrf.mxu0
      %v824 = vadd.f32 0.0, %v823
      %v825 = vpop.f32.mrf.mxu0
      %v826 = vpop.f32.mrf.mxu0
      %v827 = vadd.f32 0.0, %v826
      %v828 = vpop.f32.mrf.mxu0
      %829 = vmatprep.mubr.bf16.mxu0 0
      %830 = vmatmul.mubr.bf16.gmra.mxu0 %v705
      %v831 = vpop.f32.mrf.mxu0
      %v832 = vadd.f32 0.0, %v831
      %v833 = vpop.f32.mrf.mxu0
      %v834 = vpop.f32.mrf.mxu0
      %v835 = vadd.f32 0.0, %v834
      %v836 = vpop.f32.mrf.mxu0
      %837 = vmatprep.mubr.bf16.mxu0 0
      %838 = vmatmul.mubr.bf16.gmra.mxu0 %v706
      %v839 = vpop.f32.mrf.mxu0
      %v840 = vadd.f32 0.0, %v839
      %v841 = vpop.f32.mrf.mxu0
      %v842 = vpop.f32.mrf.mxu0
      %v843 = vadd.f32 0.0, %v842
      %v844 = vpop.f32.mrf.mxu0
      %845 = vmatprep.mubr.bf16.mxu0 0
      %846 = vmatmul.mubr.bf16.gmra.mxu0 %v707
      %v847 = vpop.f32.mrf.mxu0
      %v848 = vadd.f32 0.0, %v847
      %v849 = vpop.f32.mrf.mxu0
      %v850 = vpop.f32.mrf.mxu0
      %v851 = vadd.f32 0.0, %v850
      %v852 = vpop.f32.mrf.mxu0
      %853 = vmatprep.mubr.bf16.mxu0 0
      %854 = vmatmul.mubr.bf16.gmra.mxu0 %v708
      %v855 = vpop.f32.mrf.mxu0
      %v856 = vadd.f32 0.0, %v855
      %v857 = vpop.f32.mrf.mxu0
      %v858 = vpop.f32.mrf.mxu0
      %v859 = vadd.f32 0.0, %v858
      %v860 = vpop.f32.mrf.mxu0
      %861 = vdwg.mxu0
      %v862 = vmax.f32 %v800, 0.0
      %v863 = vmax.f32 %v803, 0.0
      %v864 = vmax.f32 %v808, 0.0
      %v865 = vmax.f32 %v811, 0.0
      %v866 = vmax.f32 %v816, 0.0
      %v867 = vmax.f32 %v819, 0.0
      %v868 = vmax.f32 %v824, 0.0
      %v869 = vmax.f32 %v827, 0.0
      %v870 = vmax.f32 %v832, 0.0
      %v871 = vmax.f32 %v835, 0.0
      %v872 = vmax.f32 %v840, 0.0
      %v873 = vmax.f32 %v843, 0.0
      %v874 = vmax.f32 %v848, 0.0
      %v875 = vmax.f32 %v851, 0.0
      %v876 = vmax.f32 %v856, 0.0
      %v877 = vmax.f32 %v859, 0.0
      %v878 = vld [vmem:[#allocation2] sm:$0xf]
      %v879 = vld [vmem:[#allocation2 + $0x4] sm:$0xf]
      %v880 = vld [vmem:[#allocation2 + $0x8] sm:$0xf]
      %v881 = vld [vmem:[#allocation2 + $0xc] sm:$0xf]
      %v882 = vld [vmem:[#allocation2 + $0x10] sm:$0xf]
      %v883 = vld [vmem:[#allocation2 + $0x14] sm:$0xf]
      %v884 = vld [vmem:[#allocation2 + $0x18] sm:$0xf]
      %v885 = vld [vmem:[#allocation2 + $0x1c] sm:$0xf]
      %v886 = vld [vmem:[#allocation2 + $0x20] sm:$0xf]
      %v887 = vld [vmem:[#allocation2 + $0x24] sm:$0xf]
      %v888 = vld [vmem:[#allocation2 + $0x28] sm:$0xf]
      %v889 = vld [vmem:[#allocation2 + $0x2c] sm:$0xf]
      %v890 = vld [vmem:[#allocation2 + $0x30] sm:$0xf]
      %v891 = vld [vmem:[#allocation2 + $0x34] sm:$0xf]
      %v892 = vld [vmem:[#allocation2 + $0x38] sm:$0xf]
      %v893 = vld [vmem:[#allocation2 + $0x3c] sm:$0xf]
      %v894 = vpack.c.bf16 %v863, %v862
      %v895 = vpack.c.bf16 %v865, %v864
      %v896 = vpack.c.bf16 %v867, %v866
      %v897 = vpack.c.bf16 %v869, %v868
      %v898 = vpack.c.bf16 %v871, %v870
      %v899 = vpack.c.bf16 %v873, %v872
      %v900 = vpack.c.bf16 %v875, %v874
      %v901 = vpack.c.bf16 %v877, %v876
      %v918 = vunpack.c.l.b16 %v878
      %v919 = vunpack.c.l.b16 %v879
      %v920 = vunpack.c.l.b16 %v880
      %v921 = vunpack.c.l.b16 %v881
      %v922 = vunpack.c.l.b16 %v882
      %v923 = vunpack.c.l.b16 %v883
      %v924 = vunpack.c.l.b16 %v884
      %v925 = vunpack.c.l.b16 %v885
      %v926 = vunpack.c.l.b16 %v886
      %v927 = vunpack.c.l.b16 %v887
      %v928 = vunpack.c.l.b16 %v888
      %v929 = vunpack.c.l.b16 %v889
      %v930 = vunpack.c.l.b16 %v890
      %v931 = vunpack.c.l.b16 %v891
      %v932 = vunpack.c.l.b16 %v892
      %v933 = vunpack.c.l.b16 %v893
      %v934 = vpack.c.b16 %v919, %v918
      %v935 = vpack.c.b16 %v921, %v920
      %v936 = vpack.c.b16 %v923, %v922
      %v937 = vpack.c.b16 %v925, %v924
      %v938 = vpack.c.b16 %v927, %v926
      %v939 = vpack.c.b16 %v929, %v928
      %v940 = vpack.c.b16 %v931, %v930
      %v941 = vpack.c.b16 %v933, %v932
      %950 = vmatprep.subr.bf16.mxu0 0
      %951 = vmatpush1.bf16.xpose.msra.mxu0 %v901
      %952 = vmatprep.subr.bf16.mxu0 0
      %953 = vmatpush1.bf16.xpose.msra.mxu0 %v900
      %954 = vmatprep.subr.bf16.mxu0 0
      %955 = vmatpush1.bf16.xpose.msra.mxu0 %v899
      %956 = vmatprep.subr.bf16.mxu0 0
      %957 = vmatpush1.bf16.xpose.msra.mxu0 %v898
      %958 = vmatprep.subr.bf16.mxu0 0
      %959 = vmatpush1.bf16.xpose.msra.mxu0 %v897
      %960 = vmatprep.subr.bf16.mxu0 0
      %961 = vmatpush1.bf16.xpose.msra.mxu0 %v896
      %962 = vmatprep.subr.bf16.mxu0 0
      %963 = vmatpush1.bf16.xpose.msra.mxu0 %v895
      %964 = vmatprep.subr.bf16.mxu0 0
      %965 = vmatpush1.bf16.xpose.msra.mxu0 %v894
      %966 = vmatprep.subr.bf16.mxu0 0
      %967 = vmatpush2.bf16.xpose.msra.mxu0 0
      %968 = vmatprep.subr.bf16.mxu0 0
      %969 = vmatpush2.bf16.xpose.msra.mxu0 0
      %970 = vmatprep.subr.bf16.mxu0 0
      %971 = vmatpush2.bf16.xpose.msra.mxu0 0
      %972 = vmatprep.subr.bf16.mxu0 0
      %973 = vmatpush2.bf16.xpose.msra.mxu0 0
      %974 = vmatprep.subr.bf16.mxu0 0
      %975 = vmatpush2.bf16.xpose.msra.mxu0 0
      %976 = vmatprep.subr.bf16.mxu0 0
      %977 = vmatpush2.bf16.xpose.msra.mxu0 0
      %978 = vmatprep.subr.bf16.mxu0 0
      %979 = vmatpush2.bf16.xpose.msra.mxu0 0
      %980 = vmatprep.subr.bf16.mxu0 0
      %981 = vmatpush2.bf16.xpose.msra.mxu0 0
      %982 = vmatprep.mubr.bf16.mxu0 0
      %983 = vmatmul.mubr.bf16.gmra.mxu0 %v934
      %v984 = vpop.f32.mrf.mxu0
      %v985 = vadd.f32 0.0, %v984
      %v986 = vpop.f32.mrf.mxu0
      %v987 = vpop.f32.mrf.mxu0
      %v988 = vadd.f32 0.0, %v987
      %v989 = vpop.f32.mrf.mxu0
      %990 = vmatprep.mubr.bf16.mxu0 0
      %991 = vmatmul.mubr.bf16.gmra.mxu0 %v935
      %v992 = vpop.f32.mrf.mxu0
      %v993 = vadd.f32 0.0, %v992
      %v994 = vpop.f32.mrf.mxu0
      %v995 = vpop.f32.mrf.mxu0
      %v996 = vadd.f32 0.0, %v995
      %v997 = vpop.f32.mrf.mxu0
      %998 = vmatprep.mubr.bf16.mxu0 0
      %999 = vmatmul.mubr.bf16.gmra.mxu0 %v936
      %v1000 = vpop.f32.mrf.mxu0
      %v1001 = vadd.f32 0.0, %v1000
      %v1002 = vpop.f32.mrf.mxu0
      %v1003 = vpop.f32.mrf.mxu0
      %v1004 = vadd.f32 0.0, %v1003
      %v1005 = vpop.f32.mrf.mxu0
      %1006 = vmatprep.mubr.bf16.mxu0 0
      %1007 = vmatmul.mubr.bf16.gmra.mxu0 %v937
      %v1008 = vpop.f32.mrf.mxu0
      %v1009 = vadd.f32 0.0, %v1008
      %v1010 = vpop.f32.mrf.mxu0
      %v1011 = vpop.f32.mrf.mxu0
      %v1012 = vadd.f32 0.0, %v1011
      %v1013 = vpop.f32.mrf.mxu0
      %1014 = vmatprep.mubr.bf16.mxu0 0
      %1015 = vmatmul.mubr.bf16.gmra.mxu0 %v938
      %v1016 = vpop.f32.mrf.mxu0
      %v1017 = vadd.f32 0.0, %v1016
      %v1018 = vpop.f32.mrf.mxu0
      %v1019 = vpop.f32.mrf.mxu0
      %v1020 = vadd.f32 0.0, %v1019
      %v1021 = vpop.f32.mrf.mxu0
      %1022 = vmatprep.mubr.bf16.mxu0 0
      %1023 = vmatmul.mubr.bf16.gmra.mxu0 %v939
      %v1024 = vpop.f32.mrf.mxu0
      %v1025 = vadd.f32 0.0, %v1024
      %v1026 = vpop.f32.mrf.mxu0
      %v1027 = vpop.f32.mrf.mxu0
      %v1028 = vadd.f32 0.0, %v1027
      %v1029 = vpop.f32.mrf.mxu0
      %1030 = vmatprep.mubr.bf16.mxu0 0
      %1031 = vmatmul.mubr.bf16.gmra.mxu0 %v940
      %v1032 = vpop.f32.mrf.mxu0
      %v1033 = vadd.f32 0.0, %v1032
      %v1034 = vpop.f32.mrf.mxu0
      %v1035 = vpop.f32.mrf.mxu0
      %v1036 = vadd.f32 0.0, %v1035
      %v1037 = vpop.f32.mrf.mxu0
      %1038 = vmatprep.mubr.bf16.mxu0 0
      %1039 = vmatmul.mubr.bf16.gmra.mxu0 %v941
      %v1040 = vpop.f32.mrf.mxu0
      %v1041 = vadd.f32 0.0, %v1040
      %v1042 = vpop.f32.mrf.mxu0
      %v1043 = vpop.f32.mrf.mxu0
      %v1044 = vadd.f32 0.0, %v1043
      %v1045 = vpop.f32.mrf.mxu0
      %1046 = vdwg.mxu0
      %1047 = vst [vmem:[%s286] sm:$0xff] %v985
      %1048 = vst [vmem:[%s286 + $0x8] sm:$0xff] %v988
      %1049 = vst [vmem:[%s286 + $0x10] sm:$0xff] %v993
      %1050 = vst [vmem:[%s286 + $0x18] sm:$0xff] %v996
      %1051 = vst [vmem:[%s286 + $0x20] sm:$0xff] %v1001
      %1052 = vst [vmem:[%s286 + $0x28] sm:$0xff] %v1004
      %1053 = vst [vmem:[%s286 + $0x30] sm:$0xff] %v1009
      %1054 = vst [vmem:[%s286 + $0x38] sm:$0xff] %v1012
      %1055 = vst [vmem:[%s286 + $0x40] sm:$0xff] %v1017
      %1056 = vst [vmem:[%s286 + $0x48] sm:$0xff] %v1020
      %1057 = vst [vmem:[%s286 + $0x50] sm:$0xff] %v1025
      %1058 = vst [vmem:[%s286 + $0x58] sm:$0xff] %v1028
      %1059 = vst [vmem:[%s286 + $0x60] sm:$0xff] %v1033
      %1060 = vst [vmem:[%s286 + $0x68] sm:$0xff] %v1036
      %1061 = vst [vmem:[%s286 + $0x70] sm:$0xff] %v1041
      %1062 = vst [vmem:[%s286 + $0x78] sm:$0xff] %v1044
      %s1063 = smul.u32 16, %s21
      %p1064 = scmp.lt.s32.totalorder %s20, 1
      %s1065 = scalar_select %p1064, %s20, 1
      %p1066 = scmp.lt.s32.totalorder %s1063, 15
      %s1067 = scalar_select %p1066, %s1063, 15
      %p1068 = scmp.lt.s32.totalorder %s22, 0
      %s1069 = scalar_select %p1068, %s22, 0
      %s1070 = sadd.s32 %s1069, %s1067
      %s1071 = smul.addr %s1065, 16
      %s1072 = sadd.s32 %s1070, %s1071
      %s1073 = smul.addr %s1072, 8
      %s1074 = scalar_lea.vmem %s4, %s1073
      // Predicated region
      $region41: #{attention_score.1} parent=35 // pred_check
        %p1075 = pneg %p154
      $region42: #{attention_score.1} parent=35 // pred_check_branch
        %1077 = sbr.rel (%p1075) target = $region44
      $region43: #{attention_score.1} parent=35 // pred_region
        %s1078 = smul.u32 16, %s21
      $region44: #{attention_score.1} parent=35 // pred_fallthru
        _
    $region36: #{attention_score.1} parent=5 // pred_fallthru
      _
    %p1079 = scmp.le.s32.totalorder 2, %s10
    // Predicated region
    $region45: #{attention_score.1} parent=5 // pred_check
      %p1080 = pneg %p1079
    $region46: #{attention_score.1} parent=5 // pred_check_branch
      %1082 = sbr.rel (%p1080) target = $region48
    $region47: #{attention_score.1} parent=5 // pred_region
      %s1083 = ssub.s32 %s10, 2
      // Predicated region
      $region49: #{attention_score.1} parent=47 // pred_check
        %p1084 = pneg %p160
      $region50: #{attention_score.1} parent=47 // pred_check_branch
        %1086 = sbr.rel (%p1084) target = $region52
      $region51: #{attention_score.1} parent=47 // pred_region
        %s1087 = smul.u32 16, %s24
        %p1088 = scmp.lt.s32.totalorder %s23, 1
        %s1089 = scalar_select %p1088, %s23, 1
        %p1090 = scmp.lt.s32.totalorder %s1087, 15
        %s1091 = scalar_select %p1090, %s1087, 15
        %p1092 = scmp.lt.s32.totalorder %s25, 0
        %s1093 = scalar_select %p1092, %s25, 0
        %s1094 = sadd.s32 %s1093, %s1091
        %s1095 = smul.addr %s1089, 16
        %s1096 = sadd.s32 %s1094, %s1095
        %s1097 = smul.addr %s1096, 8
        %s1098 = scalar_lea.vmem %s4, %s1097
      $region52: #{attention_score.1} parent=47 // pred_fallthru
        _
    $region48: #{attention_score.1} parent=5 // pred_fallthru
      _
  $region6: #{attention_score.1} parent=0 // loop_footer
    %s14 = sadd.s32 1, %s10
  $region7: #{attention_score.1} parent=0 // loop_footer_branch
    %9 = sbr.rel target = $region3
  $region8: #{attention_score.1} parent=0 // loop_exit
    _

</llo_original>
